<compile_context>
chip_gen: v7x
topology: tpu7x:2x2x1
jax: 0.10.0
libtpu: 0.0.40
codegen_flags: <defaults>
</compile_context>

<pallas_src>
import functools

import jax
import jax.numpy as jnp
from jax.experimental import pallas as pl
from jax.experimental.pallas import tpu as pltpu


_NEG_BIG = -1e30  # mask value for padded logit lanes (finite, avoids inf-inf NaNs)


def _round_up(x, m):
    return (x + m - 1) // m * m


def _rnn_classifier_kernel(x_ref, wih_ref, whh_ref, b_ref, wout_ref, bout_ref,
                           out_ref, *, matmul_dtype, time_chunk):
    """One batch tile: chunked hoisted input projection + unrolled recurrence
    + output linear + log-softmax.

    x_ref:    (seq_len, B_tile, Ipad)  characters, time-major, matmul_dtype
    wih_ref:  (Ipad, Hpad)             W_ih^T, zero-padded rows/cols, matmul_dtype
    whh_ref:  (Hpad, Hpad)             W_hh^T, zero-padded, matmul_dtype
    b_ref:    (1, Hpad)                b_ih + b_hh (f32), zero-padded
    wout_ref: (Hpad, Opad)             W_out^T, zero-padded, matmul_dtype
    bout_ref: (1, Opad)                b_out (f32), padded lanes = -1e30 (softmax mask)
    out_ref:  (B_tile, Opad)           f32 log-probabilities (padded lanes ~ -1e30)
    """
    seq_len, b_tile, i_pad = x_ref.shape
    h_pad = whh_ref.shape[0]

    wih = wih_ref[...]          # (Ipad, Hpad)
    whh = whh_ref[...]          # (Hpad, Hpad)
    b = b_ref[...]              # (1, Hpad) f32

    h = jnp.zeros((b_tile, h_pad), jnp.float32)

    # Serial recurrence. The input projection is hoisted per time-chunk: one big
    # lane-dense (chunk*B, 128) @ (128, Hpad) MXU matmul feeds `chunk` timesteps,
    # which bounds the f32 `pre` buffer (and vreg live ranges) regardless of
    # total name length.  All trip counts / slices are static.
    # TODO(synk): for very long seq_len, switch the chunk loop to lax.fori_loop
    # with pl.ds(pl.multiple_of(...)) indexing to cap generated code size.
    for c in range(0, seq_len, time_chunk):
        cur = min(time_chunk, seq_len - c)
        x_chunk = x_ref[c:c + cur, :, :].reshape(cur * b_tile, i_pad)
        pre = jnp.dot(x_chunk, wih, preferred_element_type=jnp.float32) + b   # f32
        for t in range(cur):
            pre_t = pre[t * b_tile:(t + 1) * b_tile, :]
            # W_hh^T is loop-invariant and VMEM-resident; explicit MXU staging
            # (matmul_push_rhs) is intentionally not used for portability.
            hh = jnp.dot(h.astype(matmul_dtype), whh,
                         preferred_element_type=jnp.float32)
            h = jnp.tanh(pre_t + hh)                                          # f32 tanh (EUP)

    # Output projection + numerically stable log-softmax (padded lanes masked
    # to ~-1e30 via bout -> exp underflows to 0, softmax unaffected).
    logits = jnp.dot(h.astype(matmul_dtype), wout_ref[...],
                     preferred_element_type=jnp.float32) + bout_ref[...]      # (B, Opad)
    m = jnp.max(logits, axis=-1, keepdims=True)
    z = logits - m
    lse = jnp.log(jnp.sum(jnp.exp(z), axis=-1, keepdims=True))
    out_ref[...] = z - lse


def prepare_params(params, *, matmul_dtype=jnp.bfloat16):
    """One-time weight prep: transpose, fuse RNNCell biases, pad lane dims.

    Input features are padded to a multiple of 128 (lane-dense x / full-K MXU
    contraction); hidden and output dims are padded to multiples of 128.
    Matmul operands default to bf16 (MXU-native on v5e/v6e/v7x); biases stay
    f32 and accumulation is f32 everywhere.
    """
    w_ih = jnp.asarray(params["w_ih"], jnp.float32)    # (H, I)
    w_hh = jnp.asarray(params["w_hh"], jnp.float32)    # (H, H)
    b_ih = jnp.asarray(params["b_ih"], jnp.float32)    # (H,)
    b_hh = jnp.asarray(params["b_hh"], jnp.float32)    # (H,)
    w_out = jnp.asarray(params["w_out"], jnp.float32)  # (O, H)
    b_out = jnp.asarray(params["b_out"], jnp.float32)  # (O,)

    hidden, in_size = w_ih.shape
    out_size = w_out.shape[0]
    i_pad = _round_up(in_size, 128)
    h_pad = _round_up(hidden, 128)
    o_pad = _round_up(out_size, 128)

    wih_t = jnp.zeros((i_pad, h_pad), jnp.float32).at[:in_size, :hidden].set(w_ih.T)
    whh_t = jnp.zeros((h_pad, h_pad), jnp.float32).at[:hidden, :hidden].set(w_hh.T)
    b = jnp.zeros((1, h_pad), jnp.float32).at[0, :hidden].set(b_ih + b_hh)
    wout_t = jnp.zeros((h_pad, o_pad), jnp.float32).at[:hidden, :out_size].set(w_out.T)
    bout = jnp.full((1, o_pad), _NEG_BIG, jnp.float32).at[0, :out_size].set(b_out)

    return {
        "wih_t": wih_t.astype(matmul_dtype),
        "whh_t": whh_t.astype(matmul_dtype),
        "wout_t": wout_t.astype(matmul_dtype),
        "b": b,                                # f32, added post-matmul
        "bout": bout,                          # f32, softmax-mask in padded lanes
        "in_size": in_size, "hidden": hidden, "out_size": out_size,
        "i_pad": i_pad, "h_pad": h_pad, "o_pad": o_pad,
        "matmul_dtype": matmul_dtype,
    }


def rnn_name_classifier_forward(names, prepared, *, b_tile=None, time_chunk=None):
    """names: (seq_len, I) single name or (B, seq_len, I) batch of equal-length names.

    Returns (1, O) or (B, O) float32 log-probabilities.
    """
    # TODO(synk): variable-length names would need per-timestep masking; this
    # batched kernel assumes equal-length (as produced by padding-free batching).
    names = jnp.asarray(names, jnp.float32)
    if names.ndim == 2:
        names = names[None]
    batch, seq_len, in_size = names.shape
    assert in_size == prepared["in_size"]

    matmul_dtype = prepared["matmul_dtype"]
    i_pad, h_pad, o_pad = prepared["i_pad"], prepared["h_pad"], prepared["o_pad"]
    dsz = jnp.dtype(matmul_dtype).itemsize

    # Batch tile: multiple of 8 sublanes, capped at the 256-row v6e/v7x MXU, and
    # forced to >= 2 "parallel" tiles when the batch allows (keeps both v7x
    # TensorCores busy).
    if b_tile is None:
        b_pad8 = _round_up(batch, 8)
        b_tile = min(b_pad8, 256)
        if b_pad8 >= 16 and b_pad8 // b_tile < 2:
            b_tile = _round_up((b_pad8 + 1) // 2, 8)
    b_tile = _round_up(int(b_tile), 8)
    b_pad = _round_up(batch, b_tile)

    if time_chunk is None:
        time_chunk = max(1, min(seq_len, 16))
    time_chunk = int(min(time_chunk, seq_len))

    # Time-major, batch- and feature-padded layout in matmul_dtype:
    # (seq_len, B_pad, Ipad).  Cast once here (not per-tile in the kernel).
    x = jnp.zeros((b_pad, seq_len, i_pad), matmul_dtype)
    x = x.at[:batch, :, :in_size].set(names.astype(matmul_dtype))
    x = jnp.transpose(x, (1, 0, 2))

    kernel = functools.partial(_rnn_classifier_kernel,
                               matmul_dtype=matmul_dtype,
                               time_chunk=time_chunk)
    const = lambda i: (0, 0)   # weights: same block every grid step -> VMEM-resident

    # VMEM budget estimate (double-buffered x/weights/out + chunked pre + temps),
    # clamped to [16 MiB, 64 MiB] so it is safe on every generation.
    est = 2 * seq_len * b_tile * i_pad * dsz                                   # x
    est += 2 * (i_pad * h_pad + h_pad * h_pad + h_pad * o_pad) * dsz           # weights
    est += 2 * (h_pad + o_pad) * 4                                             # biases
    est += 2 * b_tile * o_pad * 4                                              # out
    est += time_chunk * b_tile * h_pad * 4                                     # pre chunk
    est += 8 * b_tile * h_pad * 4                                              # h + temps
    vmem_limit = int(min(max(est + (8 << 20), 16 << 20), 64 << 20))

    out_pad = pl.pallas_call(
        kernel,
        out_shape=jax.ShapeDtypeStruct((b_pad, o_pad), jnp.float32),
        grid=(b_pad // b_tile,),
        in_specs=[
            pl.BlockSpec((seq_len, b_tile, i_pad), lambda i: (0, i, 0)),
            pl.BlockSpec((i_pad, h_pad), const),
            pl.BlockSpec((h_pad, h_pad), const),
            pl.BlockSpec((1, h_pad), const),
            pl.BlockSpec((h_pad, o_pad), const),
            pl.BlockSpec((1, o_pad), const),
        ],
        out_specs=pl.BlockSpec((b_tile, o_pad), lambda i: (i, 0)),
        compiler_params=pltpu.CompilerParams(
            dimension_semantics=("parallel",),
            vmem_limit_bytes=vmem_limit),
    )(x, prepared["wih_t"], prepared["whh_t"], prepared["b"],
      prepared["wout_t"], prepared["bout"])

    return out_pad[:batch, :prepared["out_size"]]


def init_params(key, input_size, hidden_size, output_size):
    """Deterministic init mirroring PyTorch default U(-1/sqrt(fan), 1/sqrt(fan))."""
    ks = jax.random.split(key, 6)
    s = 1.0 / jnp.sqrt(hidden_size)
    return {
        "w_ih": jax.random.uniform(ks[0], (hidden_size, input_size), jnp.float32, -s, s),
        "w_hh": jax.random.uniform(ks[1], (hidden_size, hidden_size), jnp.float32, -s, s),
        "b_ih": jax.random.uniform(ks[2], (hidden_size,), jnp.float32, -s, s),
        "b_hh": jax.random.uniform(ks[3], (hidden_size,), jnp.float32, -s, s),
        "w_out": jax.random.uniform(ks[4], (output_size, hidden_size), jnp.float32, -s, s),
        "b_out": jax.random.uniform(ks[5], (output_size,), jnp.float32, -s, s),
    }


# TODO(synk): do_training (Adam / NLLLoss loop) is host-side training logic, not a kernel.

if __name__ == "__main__":
    input_size, hidden_size, output_size = 16, 32, 8
    seq_len, batch = 8, 4

    key = jax.random.PRNGKey(0)
    k_params, k_names = jax.random.split(key)
    raw = init_params(k_params, input_size, hidden_size, output_size)
    names = jax.random.normal(k_names, (batch, seq_len, input_size), jnp.float32)

    # Pure-JAX reference mirroring the PyTorch module exactly (per name).
    def ref_one(name):
        h = jnp.zeros((1, hidden_size), jnp.float32)
        for t in range(seq_len):
            pre = (name[t][None, :] @ raw["w_ih"].T + raw["b_ih"]
                   + h @ raw["w_hh"].T + raw["b_hh"])
            h = jnp.tanh(pre)
        logits = h @ raw["w_out"].T + raw["b_out"]
        return jax.nn.log_softmax(logits, axis=-1)[0]

    ref = jnp.stack([ref_one(names[i]) for i in range(batch)])

    # 1) f32 matmul operands: tight correctness check against the reference.
    prep_f32 = prepare_params(raw, matmul_dtype=jnp.float32)
    out_f32 = rnn_name_classifier_forward(names, prep_f32)
    jax.block_until_ready(out_f32)
    assert out_f32.shape == (batch, output_size)
    assert jnp.allclose(jnp.sum(jnp.exp(out_f32), axis=-1), 1.0, atol=1e-4)
    err_f32 = float(jnp.max(jnp.abs(out_f32 - ref)))
    assert jnp.allclose(out_f32, ref, atol=1e-4, rtol=1e-4), err_f32

    # 2) Default bf16 matmul operands (f32 accumulation): MXU-friendly on all
    #    generations; looser tolerance due to per-step bf16 recast of h.
    prep_bf16 = prepare_params(raw)   # matmul_dtype defaults to bfloat16
    out_bf16 = rnn_name_classifier_forward(names, prep_bf16)
    jax.block_until_ready(out_bf16)
    assert out_bf16.shape == (batch, output_size)
    assert jnp.allclose(jnp.sum(jnp.exp(out_bf16), axis=-1), 1.0, atol=1e-3)
    err_bf16 = float(jnp.max(jnp.abs(out_bf16 - ref)))
    assert jnp.allclose(out_bf16, ref, atol=5e-2, rtol=5e-2), err_bf16

    print("KERNEL_OK")
</pallas_src>

<mosaic_0001>
module attributes {stable_mosaic.version = 11 : i64} {
  func.func @_rnn_classifier_kernel(%arg0: i32, %arg1: memref<8x8x128xf32, #tpu.memory_space<vmem>>, %arg2: memref<128x128xf32, #tpu.memory_space<vmem>>, %arg3: memref<128x128xf32, #tpu.memory_space<vmem>>, %arg4: memref<1x128xf32, #tpu.memory_space<vmem>>, %arg5: memref<128x128xf32, #tpu.memory_space<vmem>>, %arg6: memref<1x128xf32, #tpu.memory_space<vmem>>, %arg7: memref<8x128xf32, #tpu.memory_space<vmem>>) attributes {dimension_semantics = [#tpu.dimension_semantics<parallel>], iteration_bounds = array<i64: 1>, scalar_prefetch = 0 : i64, scratch_operands = 0 : i64, tpu.core_type = #tpu.core_type<tc>, window_params = [{transform_indices = @transform_0, window_bounds = array<i64: 8, 8, 128>}, {pipeline_mode = #tpu.pipeline_mode<synchronous>, transform_indices = @transform_1, window_bounds = array<i64: 128, 128>}, {pipeline_mode = #tpu.pipeline_mode<synchronous>, transform_indices = @transform_2, window_bounds = array<i64: 128, 128>}, {pipeline_mode = #tpu.pipeline_mode<synchronous>, transform_indices = @transform_3, window_bounds = array<i64: 1, 128>}, {pipeline_mode = #tpu.pipeline_mode<synchronous>, transform_indices = @transform_4, window_bounds = array<i64: 128, 128>}, {pipeline_mode = #tpu.pipeline_mode<synchronous>, transform_indices = @transform_5, window_bounds = array<i64: 1, 128>}, {transform_indices = @transform_6, window_bounds = array<i64: 8, 128>}]} {
    %c0 = arith.constant 0 : index
    %c0_0 = arith.constant 0 : index
    %0 = vector.load %arg2[%c0, %c0_0] : memref<128x128xf32, #tpu.memory_space<vmem>>, vector<128x128xf32>
    %c0_1 = arith.constant 0 : index
    %c0_2 = arith.constant 0 : index
    %1 = vector.load %arg3[%c0_1, %c0_2] : memref<128x128xf32, #tpu.memory_space<vmem>>, vector<128x128xf32>
    %c0_3 = arith.constant 0 : index
    %c0_4 = arith.constant 0 : index
    %2 = vector.load %arg4[%c0_3, %c0_4] : memref<1x128xf32, #tpu.memory_space<vmem>>, vector<1x128xf32>
    %cst = arith.constant 0.000000e+00 : f32
    %3 = vector.broadcast %cst : f32 to vector<8x128xf32>
    %c0_5 = arith.constant 0 : index
    %c0_6 = arith.constant 0 : index
    %c0_7 = arith.constant 0 : index
    %4 = vector.load %arg1[%c0_5, %c0_6, %c0_7] : memref<8x8x128xf32, #tpu.memory_space<vmem>>, vector<8x8x128xf32>
    %5 = vector.shape_cast %4 : vector<8x8x128xf32> to vector<64x128xf32>
    %cst_8 = arith.constant dense<0.000000e+00> : vector<64x128xf32>
    %6 = tpu.matmul %5, %0, %cst_8 {dimension_numbers = #tpu.dot_dimension_numbers<[1], [0], [0], [1], [0, 0, 1, 1], [], []>} : vector<64x128xf32>, vector<128x128xf32>, vector<64x128xf32> -> vector<64x128xf32>
    %7 = vector.broadcast %2 : vector<1x128xf32> to vector<64x128xf32>
    %8 = arith.addf %6, %7 : vector<64x128xf32>
    %9 = vector.extract_strided_slice %8 {offsets = [0, 0], sizes = [8, 128], strides = [1, 1]} : vector<64x128xf32> to vector<8x128xf32>
    %cst_9 = arith.constant dense<0.000000e+00> : vector<8x128xf32>
    %10 = tpu.matmul %3, %1, %cst_9 {dimension_numbers = #tpu.dot_dimension_numbers<[1], [0], [0], [1], [0, 0, 1, 1], [], []>} : vector<8x128xf32>, vector<128x128xf32>, vector<8x128xf32> -> vector<8x128xf32>
    %11 = arith.addf %9, %10 : vector<8x128xf32>
    %12 = math.tanh %11 : vector<8x128xf32>
    %13 = vector.extract_strided_slice %8 {offsets = [8, 0], sizes = [8, 128], strides = [1, 1]} : vector<64x128xf32> to vector<8x128xf32>
    %cst_10 = arith.constant dense<0.000000e+00> : vector<8x128xf32>
    %14 = tpu.matmul %12, %1, %cst_10 {dimension_numbers = #tpu.dot_dimension_numbers<[1], [0], [0], [1], [0, 0, 1, 1], [], []>} : vector<8x128xf32>, vector<128x128xf32>, vector<8x128xf32> -> vector<8x128xf32>
    %15 = arith.addf %13, %14 : vector<8x128xf32>
    %16 = math.tanh %15 : vector<8x128xf32>
    %17 = vector.extract_strided_slice %8 {offsets = [16, 0], sizes = [8, 128], strides = [1, 1]} : vector<64x128xf32> to vector<8x128xf32>
    %cst_11 = arith.constant dense<0.000000e+00> : vector<8x128xf32>
    %18 = tpu.matmul %16, %1, %cst_11 {dimension_numbers = #tpu.dot_dimension_numbers<[1], [0], [0], [1], [0, 0, 1, 1], [], []>} : vector<8x128xf32>, vector<128x128xf32>, vector<8x128xf32> -> vector<8x128xf32>
    %19 = arith.addf %17, %18 : vector<8x128xf32>
    %20 = math.tanh %19 : vector<8x128xf32>
    %21 = vector.extract_strided_slice %8 {offsets = [24, 0], sizes = [8, 128], strides = [1, 1]} : vector<64x128xf32> to vector<8x128xf32>
    %cst_12 = arith.constant dense<0.000000e+00> : vector<8x128xf32>
    %22 = tpu.matmul %20, %1, %cst_12 {dimension_numbers = #tpu.dot_dimension_numbers<[1], [0], [0], [1], [0, 0, 1, 1], [], []>} : vector<8x128xf32>, vector<128x128xf32>, vector<8x128xf32> -> vector<8x128xf32>
    %23 = arith.addf %21, %22 : vector<8x128xf32>
    %24 = math.tanh %23 : vector<8x128xf32>
    %25 = vector.extract_strided_slice %8 {offsets = [32, 0], sizes = [8, 128], strides = [1, 1]} : vector<64x128xf32> to vector<8x128xf32>
    %cst_13 = arith.constant dense<0.000000e+00> : vector<8x128xf32>
    %26 = tpu.matmul %24, %1, %cst_13 {dimension_numbers = #tpu.dot_dimension_numbers<[1], [0], [0], [1], [0, 0, 1, 1], [], []>} : vector<8x128xf32>, vector<128x128xf32>, vector<8x128xf32> -> vector<8x128xf32>
    %27 = arith.addf %25, %26 : vector<8x128xf32>
    %28 = math.tanh %27 : vector<8x128xf32>
    %29 = vector.extract_strided_slice %8 {offsets = [40, 0], sizes = [8, 128], strides = [1, 1]} : vector<64x128xf32> to vector<8x128xf32>
    %cst_14 = arith.constant dense<0.000000e+00> : vector<8x128xf32>
    %30 = tpu.matmul %28, %1, %cst_14 {dimension_numbers = #tpu.dot_dimension_numbers<[1], [0], [0], [1], [0, 0, 1, 1], [], []>} : vector<8x128xf32>, vector<128x128xf32>, vector<8x128xf32> -> vector<8x128xf32>
    %31 = arith.addf %29, %30 : vector<8x128xf32>
    %32 = math.tanh %31 : vector<8x128xf32>
    %33 = vector.extract_strided_slice %8 {offsets = [48, 0], sizes = [8, 128], strides = [1, 1]} : vector<64x128xf32> to vector<8x128xf32>
    %cst_15 = arith.constant dense<0.000000e+00> : vector<8x128xf32>
    %34 = tpu.matmul %32, %1, %cst_15 {dimension_numbers = #tpu.dot_dimension_numbers<[1], [0], [0], [1], [0, 0, 1, 1], [], []>} : vector<8x128xf32>, vector<128x128xf32>, vector<8x128xf32> -> vector<8x128xf32>
    %35 = arith.addf %33, %34 : vector<8x128xf32>
    %36 = math.tanh %35 : vector<8x128xf32>
    %37 = vector.extract_strided_slice %8 {offsets = [56, 0], sizes = [8, 128], strides = [1, 1]} : vector<64x128xf32> to vector<8x128xf32>
    %cst_16 = arith.constant dense<0.000000e+00> : vector<8x128xf32>
    %38 = tpu.matmul %36, %1, %cst_16 {dimension_numbers = #tpu.dot_dimension_numbers<[1], [0], [0], [1], [0, 0, 1, 1], [], []>} : vector<8x128xf32>, vector<128x128xf32>, vector<8x128xf32> -> vector<8x128xf32>
    %39 = arith.addf %37, %38 : vector<8x128xf32>
    %40 = math.tanh %39 : vector<8x128xf32>
    %c0_17 = arith.constant 0 : index
    %c0_18 = arith.constant 0 : index
    %41 = vector.load %arg5[%c0_17, %c0_18] : memref<128x128xf32, #tpu.memory_space<vmem>>, vector<128x128xf32>
    %cst_19 = arith.constant dense<0.000000e+00> : vector<8x128xf32>
    %42 = tpu.matmul %40, %41, %cst_19 {dimension_numbers = #tpu.dot_dimension_numbers<[1], [0], [0], [1], [0, 0, 1, 1], [], []>} : vector<8x128xf32>, vector<128x128xf32>, vector<8x128xf32> -> vector<8x128xf32>
    %c0_20 = arith.constant 0 : index
    %c0_21 = arith.constant 0 : index
    %43 = vector.load %arg6[%c0_20, %c0_21] : memref<1x128xf32, #tpu.memory_space<vmem>>, vector<1x128xf32>
    %44 = vector.broadcast %43 : vector<1x128xf32> to vector<8x128xf32>
    %45 = arith.addf %42, %44 : vector<8x128xf32>
    %cst_22 = arith.constant dense<0xFF800000> : vector<8xf32>
    %46 = vector.multi_reduction <maximumf>, %45, %cst_22 [1] : vector<8x128xf32> to vector<8xf32>
    %47 = vector.shape_cast %46 : vector<8xf32> to vector<8x1xf32>
    %48 = vector.broadcast %47 : vector<8x1xf32> to vector<8x128xf32>
    %49 = arith.subf %45, %48 : vector<8x128xf32>
    %50 = math.exp %49 : vector<8x128xf32>
    %cst_23 = arith.constant dense<0.000000e+00> : vector<8xf32>
    %51 = vector.multi_reduction <add>, %50, %cst_23 [1] : vector<8x128xf32> to vector<8xf32>
    %52 = vector.shape_cast %51 : vector<8xf32> to vector<8x1xf32>
    %53 = math.log %52 : vector<8x1xf32>
    %54 = vector.broadcast %53 : vector<8x1xf32> to vector<8x128xf32>
    %55 = arith.subf %49, %54 : vector<8x128xf32>
    %c0_24 = arith.constant 0 : index
    %c0_25 = arith.constant 0 : index
    %56 = vector.load %arg7[%c0_24, %c0_25] : memref<8x128xf32, #tpu.memory_space<vmem>>, vector<8x128xf32>
    tpu.vector_store %arg7[%c0_24, %c0_25], %55 {strides = array<i32>} : memref<8x128xf32, #tpu.memory_space<vmem>>, vector<8x128xf32>,
    return
  }
  func.func @transform_0(%arg0: i32) -> (i32, i32, i32) {
    %c0_i32 = arith.constant 0 : i32
    %c0_i32_0 = arith.constant 0 : i32
    %c0_i32_1 = arith.constant 0 : i32
    return %c0_i32, %arg0, %c0_i32_0 : i32, i32, i32
  }
  func.func @transform_1(%arg0: i32) -> (i32, i32) {
    %c0_i32 = arith.constant 0 : i32
    %c0_i32_0 = arith.constant 0 : i32
    %c0_i32_1 = arith.constant 0 : i32
    return %c0_i32, %c0_i32_0 : i32, i32
  }
  func.func @transform_2(%arg0: i32) -> (i32, i32) {
    %c0_i32 = arith.constant 0 : i32
    %c0_i32_0 = arith.constant 0 : i32
    %c0_i32_1 = arith.constant 0 : i32
    return %c0_i32, %c0_i32_0 : i32, i32
  }
  func.func @transform_3(%arg0: i32) -> (i32, i32) {
    %c0_i32 = arith.constant 0 : i32
    %c0_i32_0 = arith.constant 0 : i32
    %c0_i32_1 = arith.constant 0 : i32
    return %c0_i32, %c0_i32_0 : i32, i32
  }
  func.func @transform_4(%arg0: i32) -> (i32, i32) {
    %c0_i32 = arith.constant 0 : i32
    %c0_i32_0 = arith.constant 0 : i32
    %c0_i32_1 = arith.constant 0 : i32
    return %c0_i32, %c0_i32_0 : i32, i32
  }
  func.func @transform_5(%arg0: i32) -> (i32, i32) {
    %c0_i32 = arith.constant 0 : i32
    %c0_i32_0 = arith.constant 0 : i32
    %c0_i32_1 = arith.constant 0 : i32
    return %c0_i32, %c0_i32_0 : i32, i32
  }
  func.func @transform_6(%arg0: i32) -> (i32, i32) {
    %c0_i32 = arith.constant 0 : i32
    %c0_i32_0 = arith.constant 0 : i32
    return %arg0, %c0_i32 : i32, i32
  }
}

</mosaic_0001>

<llo_original>
// kernel: tpu_custom_call.1
$region0: #{tpu_custom_call.1}
  #allocation0 [shape = 'u32[]', space=smem, size = 0x4, offset = 0x4, fixed_abs, tag = 'smem constant byte address 0x4 - core index']
  #allocation1 [shape = 'u32[144,128]{1,0:T(1,128)}', space=vmem, size = 0x12000, scoped, tag = 'internal scratch']
  %s0 = inlined_call_operand.hbm [shape: f32[8,8,128], index: 0, kind: input, shape index: {}]
  %s1 = inlined_call_operand.hbm [shape: f32[128,128], index: 1, kind: input, shape index: {}]
  %s2 = inlined_call_operand.hbm [shape: f32[128,128], index: 2, kind: input, shape index: {}]
  %s3 = inlined_call_operand.vmem [shape: f32[1,128], index: 3, kind: input, shape index: {}]
  %s4 = inlined_call_operand.hbm [shape: f32[128,128], index: 4, kind: input, shape index: {}]
  %s5 = inlined_call_operand.vmem [shape: f32[1,128], index: 5, kind: input, shape index: {}]
  %s6 = inlined_call_operand.hbm [shape: f32[8,128], index: 6, kind: output, shape index: {}]
  %s7 = sld [smem:[#allocation0]]
  $region50: #{tpu_custom_call.1} parent=0
    _
  %s9 = ssub.s32 1, %s7
  %s10 = scalar_select 0, %s9, %s7
  $region1: #{tpu_custom_call.1} parent=0
    #allocation2 [shape = 'u8[32768]{0}', space=vmem, size = 0x8000, scoped, tag = 'input window, operand 0, single buffered']
    #allocation3 [shape = 's32[1]{0}', space=sflag, size = 0x4, scoped, tag = 'scoped memory for tpu_custom_call.1']
    #allocation4 [shape = 's32[1]{0}', space=sflag, size = 0x4, scoped, tag = 'scoped memory for tpu_custom_call.1']
    #allocation5 [shape = 'u8[65536]{0}', space=vmem, size = 0x10000, scoped, tag = 'input window, operand 1, single buffered']
    #allocation6 [shape = 's32[1]{0}', space=sflag, size = 0x4, scoped, tag = 'scoped memory for tpu_custom_call.1']
    #allocation7 [shape = 'u8[65536]{0}', space=vmem, size = 0x10000, scoped, tag = 'input window, operand 2, single buffered']
    #allocation8 [shape = 'u8[65536]{0}', space=vmem, size = 0x10000, scoped, tag = 'input window, operand 4, single buffered']
    #allocation9 [shape = 's32[1]{0}', space=sflag, size = 0x4, scoped, tag = 'scoped memory for tpu_custom_call.1']
    #allocation10 [shape = 'u8[4096]{0}', space=vmem, size = 0x1000, scoped, tag = 'output window, operand 0, single buffered']
    %11 = vsyncpa [#allocation3], 0
    %12 = vsyncpa [#allocation6], 0
    %13 = vsyncpa [#allocation9], 0
    %14 = vsyncpa [#allocation4], 0
    // Predicated region
    $region2: #{tpu_custom_call.1} parent=1 // pred_check
      _
    $region3: #{tpu_custom_call.1} parent=1 // pred_check_branch
      %16 = sbr.rel (0) target = $region5
    $region4: #{tpu_custom_call.1} parent=1 // pred_region
      %s18 = ssub.s32 1024, 1024
      %19 = vsyncadd [#allocation3], %s18
      %s20 = sshll.u32 [#allocation2], 4
      %s21 = int_to_ptr.vmem [resolvable:$true] %s20
      %26 = dma.hbm_to_vmem [thread:$0]  %s0, 1024, %s21, [#allocation3], 128, 128, 8
    $region5: #{tpu_custom_call.1} parent=1 // pred_fallthru
      _
    // Predicated region
    $region6: #{tpu_custom_call.1} parent=1 // pred_check
      _
    $region7: #{tpu_custom_call.1} parent=1 // pred_check_branch
      %28 = sbr.rel (0) target = $region9
    $region8: #{tpu_custom_call.1} parent=1 // pred_region
      %s30 = ssub.s32 2048, 2048
      %31 = vsyncadd [#allocation6], %s30
      %s32 = sshll.u32 [#allocation5], 4
      %s33 = int_to_ptr.vmem [resolvable:$true] %s32
      %38 = dma.hbm_to_vmem [thread:$0]  %s1, 2048, %s33, [#allocation6], 128, 128, 8
    $region9: #{tpu_custom_call.1} parent=1 // pred_fallthru
      _
    // Predicated region
    $region10: #{tpu_custom_call.1} parent=1 // pred_check
      _
    $region11: #{tpu_custom_call.1} parent=1 // pred_check_branch
      %40 = sbr.rel (0) target = $region13
    $region12: #{tpu_custom_call.1} parent=1 // pred_region
      %s42 = ssub.s32 2048, 2048
      %43 = vsyncadd [#allocation6], %s42
      %s44 = sshll.u32 [#allocation7], 4
      %s45 = int_to_ptr.vmem [resolvable:$true] %s44
      %50 = dma.hbm_to_vmem [thread:$0]  %s2, 2048, %s45, [#allocation6], 128, 128, 8
    $region13: #{tpu_custom_call.1} parent=1 // pred_fallthru
      _
    // Predicated region
    $region14: #{tpu_custom_call.1} parent=1 // pred_check
      _
    $region15: #{tpu_custom_call.1} parent=1 // pred_check_branch
      %52 = sbr.rel (0) target = $region17
    $region16: #{tpu_custom_call.1} parent=1 // pred_region
      _
    $region17: #{tpu_custom_call.1} parent=1 // pred_fallthru
      _
    // Predicated region
    $region18: #{tpu_custom_call.1} parent=1 // pred_check
      _
    $region19: #{tpu_custom_call.1} parent=1 // pred_check_branch
      %54 = sbr.rel (0) target = $region21
    $region20: #{tpu_custom_call.1} parent=1 // pred_region
      %s56 = ssub.s32 2048, 2048
      %57 = vsyncadd [#allocation9], %s56
      %s58 = sshll.u32 [#allocation8], 4
      %s59 = int_to_ptr.vmem [resolvable:$true] %s58
      %64 = dma.hbm_to_vmem [thread:$0]  %s4, 2048, %s59, [#allocation9], 128, 128, 8
    $region21: #{tpu_custom_call.1} parent=1 // pred_fallthru
      _
    // Predicated region
    $region22: #{tpu_custom_call.1} parent=1 // pred_check
      _
    $region23: #{tpu_custom_call.1} parent=1 // pred_check_branch
      %66 = sbr.rel (0) target = $region25
    $region24: #{tpu_custom_call.1} parent=1 // pred_region
      _
    $region25: #{tpu_custom_call.1} parent=1 // pred_fallthru
      _
    // Predicated region
    $region26: #{tpu_custom_call.1} parent=1 // pred_check
      _
    $region27: #{tpu_custom_call.1} parent=1 // pred_check_branch
      %68 = sbr.rel (0) target = $region29
    $region28: #{tpu_custom_call.1} parent=1 // pred_region
      %69 = dma.done [#allocation3], 1024
    $region29: #{tpu_custom_call.1} parent=1 // pred_fallthru
      _
    // Predicated region
    $region30: #{tpu_custom_call.1} parent=1 // pred_check
      _
    $region31: #{tpu_custom_call.1} parent=1 // pred_check_branch
      %71 = sbr.rel (0) target = $region33
    $region32: #{tpu_custom_call.1} parent=1 // pred_region
      %72 = dma.done [#allocation6], 2048
    $region33: #{tpu_custom_call.1} parent=1 // pred_fallthru
      _
    // Predicated region
    $region34: #{tpu_custom_call.1} parent=1 // pred_check
      _
    $region35: #{tpu_custom_call.1} parent=1 // pred_check_branch
      %74 = sbr.rel (0) target = $region37
    $region36: #{tpu_custom_call.1} parent=1 // pred_region
      %75 = dma.done [#allocation6], 2048
    $region37: #{tpu_custom_call.1} parent=1 // pred_fallthru
      _
    // Predicated region
    $region38: #{tpu_custom_call.1} parent=1 // pred_check
      _
    $region39: #{tpu_custom_call.1} parent=1 // pred_check_branch
      %77 = sbr.rel (0) target = $region41
    $region40: #{tpu_custom_call.1} parent=1 // pred_region
      %78 = dma.done [#allocation9], 2048
    $region41: #{tpu_custom_call.1} parent=1 // pred_fallthru
      _
    %v79 = vld [vmem:[#allocation5] sm:$0xff]
    %v80 = vld [vmem:[#allocation5 + $0x8] sm:$0xff]
    %v81 = vld [vmem:[#allocation5 + $0x10] sm:$0xff]
    %v82 = vld [vmem:[#allocation5 + $0x18] sm:$0xff]
    %v83 = vld [vmem:[#allocation5 + $0x20] sm:$0xff]
    %v84 = vld [vmem:[#allocation5 + $0x28] sm:$0xff]
    %v85 = vld [vmem:[#allocation5 + $0x30] sm:$0xff]
    %v86 = vld [vmem:[#allocation5 + $0x38] sm:$0xff]
    %v87 = vld [vmem:[#allocation5 + $0x40] sm:$0xff]
    %v88 = vld [vmem:[#allocation5 + $0x48] sm:$0xff]
    %v89 = vld [vmem:[#allocation5 + $0x50] sm:$0xff]
    %v90 = vld [vmem:[#allocation5 + $0x58] sm:$0xff]
    %v91 = vld [vmem:[#allocation5 + $0x60] sm:$0xff]
    %v92 = vld [vmem:[#allocation5 + $0x68] sm:$0xff]
    %v93 = vld [vmem:[#allocation5 + $0x70] sm:$0xff]
    %v94 = vld [vmem:[#allocation5 + $0x78] sm:$0xff]
    %v95 = vld [vmem:[#allocation7] sm:$0xff]
    %v96 = vld [vmem:[#allocation7 + $0x8] sm:$0xff]
    %v97 = vld [vmem:[#allocation7 + $0x10] sm:$0xff]
    %v98 = vld [vmem:[#allocation7 + $0x18] sm:$0xff]
    %v99 = vld [vmem:[#allocation7 + $0x20] sm:$0xff]
    %v100 = vld [vmem:[#allocation7 + $0x28] sm:$0xff]
    %v101 = vld [vmem:[#allocation7 + $0x30] sm:$0xff]
    %v102 = vld [vmem:[#allocation7 + $0x38] sm:$0xff]
    %v103 = vld [vmem:[#allocation7 + $0x40] sm:$0xff]
    %v104 = vld [vmem:[#allocation7 + $0x48] sm:$0xff]
    %v105 = vld [vmem:[#allocation7 + $0x50] sm:$0xff]
    %v106 = vld [vmem:[#allocation7 + $0x58] sm:$0xff]
    %v107 = vld [vmem:[#allocation7 + $0x60] sm:$0xff]
    %v108 = vld [vmem:[#allocation7 + $0x68] sm:$0xff]
    %v109 = vld [vmem:[#allocation7 + $0x70] sm:$0xff]
    %v110 = vld [vmem:[#allocation7 + $0x78] sm:$0xff]
    %v111 = vld [vmem:[%s3] sm:$0x1]
    %v112 = vld [vmem:[#allocation2] sm:$0xff]
    %v113 = vld [vmem:[#allocation2 + $0x8] sm:$0xff]
    %v114 = vld [vmem:[#allocation2 + $0x10] sm:$0xff]
    %v115 = vld [vmem:[#allocation2 + $0x18] sm:$0xff]
    %v116 = vld [vmem:[#allocation2 + $0x20] sm:$0xff]
    %v117 = vld [vmem:[#allocation2 + $0x28] sm:$0xff]
    %v118 = vld [vmem:[#allocation2 + $0x30] sm:$0xff]
    %v119 = vld [vmem:[#allocation2 + $0x38] sm:$0xff]
    %v121 = vlaneseq
    %v122 = vshrl.u32 %v121, 7
    %v123 = vsub.s32 0, %v122
    %v124 = vrot.slane %v111, %v123
    %126 = vmatprep.subr.mxu0 0.0
    %127 = vmatpush1.msra.mxu0 %v79
    %128 = vmatprep.subr.mxu0 0.0
    %129 = vmatpush1.msra.mxu0 %v80
    %130 = vmatprep.subr.mxu0 0.0
    %131 = vmatpush1.msra.mxu0 %v81
    %132 = vmatprep.subr.mxu0 0.0
    %133 = vmatpush1.msra.mxu0 %v82
    %134 = vmatprep.subr.mxu0 0.0
    %135 = vmatpush1.msra.mxu0 %v83
    %136 = vmatprep.subr.mxu0 0.0
    %137 = vmatpush1.msra.mxu0 %v84
    %138 = vmatprep.subr.mxu0 0.0
    %139 = vmatpush1.msra.mxu0 %v85
    %140 = vmatprep.subr.mxu0 0.0
    %141 = vmatpush1.msra.mxu0 %v86
    %142 = vmatprep.subr.mxu0 0.0
    %143 = vmatpush1.msra.mxu0 %v87
    %144 = vmatprep.subr.mxu0 0.0
    %145 = vmatpush1.msra.mxu0 %v88
    %146 = vmatprep.subr.mxu0 0.0
    %147 = vmatpush1.msra.mxu0 %v89
    %148 = vmatprep.subr.mxu0 0.0
    %149 = vmatpush1.msra.mxu0 %v90
    %150 = vmatprep.subr.mxu0 0.0
    %151 = vmatpush1.msra.mxu0 %v91
    %152 = vmatprep.subr.mxu0 0.0
    %153 = vmatpush1.msra.mxu0 %v92
    %154 = vmatprep.subr.mxu0 0.0
    %155 = vmatpush1.msra.mxu0 %v93
    %156 = vmatprep.subr.mxu0 0.0
    %157 = vmatpush1.msra.mxu0 %v94
    %158 = vmatprep.subr.mxu0 0.0
    %159 = vmatpush1.msra.mxu0 0.0
    %160 = vmatprep.subr.mxu0 0.0
    %161 = vmatpush1.msra.mxu0 0.0
    %162 = vmatprep.subr.mxu0 0.0
    %163 = vmatpush1.msra.mxu0 0.0
    %164 = vmatprep.subr.mxu0 0.0
    %165 = vmatpush1.msra.mxu0 0.0
    %166 = vmatprep.subr.mxu0 0.0
    %167 = vmatpush1.msra.mxu0 0.0
    %168 = vmatprep.subr.mxu0 0.0
    %169 = vmatpush1.msra.mxu0 0.0
    %170 = vmatprep.subr.mxu0 0.0
    %171 = vmatpush1.msra.mxu0 0.0
    %172 = vmatprep.subr.mxu0 0.0
    %173 = vmatpush1.msra.mxu0 0.0
    %174 = vmatprep.subr.mxu0 0.0
    %175 = vmatpush1.msra.mxu0 0.0
    %176 = vmatprep.subr.mxu0 0.0
    %177 = vmatpush1.msra.mxu0 0.0
    %178 = vmatprep.subr.mxu0 0.0
    %179 = vmatpush1.msra.mxu0 0.0
    %180 = vmatprep.subr.mxu0 0.0
    %181 = vmatpush1.msra.mxu0 0.0
    %182 = vmatprep.subr.mxu0 0.0
    %183 = vmatpush1.msra.mxu0 0.0
    %184 = vmatprep.subr.mxu0 0.0
    %185 = vmatpush1.msra.mxu0 0.0
    %186 = vmatprep.subr.mxu0 0.0
    %187 = vmatpush1.msra.mxu0 0.0
    %188 = vmatprep.subr.mxu0 0.0
    %189 = vmatpush1.msra.mxu0 0.0
    %190 = vmatprep.mubr.f32.mxu0 0.0
    %191 = vmatmul.mubr.f32.gmra.mrb[0].mxu0 %v112
    %v192 = vpop.f32.mrb[0].mxu0
    %v193 = vadd.f32 %v124, %v192
    %v194 = vpop.f32.mrb[0].mxu0
    %195 = vmatprep.mubr.f32.mxu0 0.0
    %196 = vmatmul.mubr.f32.gmra.mrb[0].mxu0 %v113
    %v197 = vpop.f32.mrb[0].mxu0
    %v198 = vadd.f32 %v124, %v197
    %v199 = vpop.f32.mrb[0].mxu0
    %200 = vmatprep.mubr.f32.mxu0 0.0
    %201 = vmatmul.mubr.f32.gmra.mrb[0].mxu0 %v114
    %v202 = vpop.f32.mrb[0].mxu0
    %v203 = vadd.f32 %v124, %v202
    %v204 = vpop.f32.mrb[0].mxu0
    %205 = vmatprep.mubr.f32.mxu0 0.0
    %206 = vmatmul.mubr.f32.gmra.mrb[0].mxu0 %v115
    %v207 = vpop.f32.mrb[0].mxu0
    %v208 = vadd.f32 %v124, %v207
    %v209 = vpop.f32.mrb[0].mxu0
    %210 = vmatprep.mubr.f32.mxu0 0.0
    %211 = vmatmul.mubr.f32.gmra.mrb[0].mxu0 %v116
    %v212 = vpop.f32.mrb[0].mxu0
    %v213 = vadd.f32 %v124, %v212
    %v214 = vpop.f32.mrb[0].mxu0
    %215 = vmatprep.mubr.f32.mxu0 0.0
    %216 = vmatmul.mubr.f32.gmra.mrb[0].mxu0 %v117
    %v217 = vpop.f32.mrb[0].mxu0
    %v218 = vadd.f32 %v124, %v217
    %v219 = vpop.f32.mrb[0].mxu0
    %220 = vmatprep.mubr.f32.mxu0 0.0
    %221 = vmatmul.mubr.f32.gmra.mrb[0].mxu0 %v118
    %v222 = vpop.f32.mrb[0].mxu0
    %v223 = vadd.f32 %v124, %v222
    %v224 = vpop.f32.mrb[0].mxu0
    %225 = vmatprep.mubr.f32.mxu0 0.0
    %226 = vmatmul.mubr.f32.gmra.mrb[0].mxu0 %v119
    %v227 = vpop.f32.mrb[0].mxu0
    %v228 = vadd.f32 %v124, %v227
    %v229 = vpop.f32.mrb[0].mxu0
    %230 = vdwg.mxu0
    %231 = vmatprep.subr.mxu0 0.0
    %232 = vmatpush1.msra.mxu0 %v95
    %233 = vmatprep.subr.mxu0 0.0
    %234 = vmatpush1.msra.mxu0 %v96
    %235 = vmatprep.subr.mxu0 0.0
    %236 = vmatpush1.msra.mxu0 %v97
    %237 = vmatprep.subr.mxu0 0.0
    %238 = vmatpush1.msra.mxu0 %v98
    %239 = vmatprep.subr.mxu0 0.0
    %240 = vmatpush1.msra.mxu0 %v99
    %241 = vmatprep.subr.mxu0 0.0
    %242 = vmatpush1.msra.mxu0 %v100
    %243 = vmatprep.subr.mxu0 0.0
    %244 = vmatpush1.msra.mxu0 %v101
    %245 = vmatprep.subr.mxu0 0.0
    %246 = vmatpush1.msra.mxu0 %v102
    %247 = vmatprep.subr.mxu0 0.0
    %248 = vmatpush1.msra.mxu0 %v103
    %249 = vmatprep.subr.mxu0 0.0
    %250 = vmatpush1.msra.mxu0 %v104
    %251 = vmatprep.subr.mxu0 0.0
    %252 = vmatpush1.msra.mxu0 %v105
    %253 = vmatprep.subr.mxu0 0.0
    %254 = vmatpush1.msra.mxu0 %v106
    %255 = vmatprep.subr.mxu0 0.0
    %256 = vmatpush1.msra.mxu0 %v107
    %257 = vmatprep.subr.mxu0 0.0
    %258 = vmatpush1.msra.mxu0 %v108
    %259 = vmatprep.subr.mxu0 0.0
    %260 = vmatpush1.msra.mxu0 %v109
    %261 = vmatprep.subr.mxu0 0.0
    %262 = vmatpush1.msra.mxu0 %v110
    %263 = vmatprep.subr.mxu0 0.0
    %264 = vmatpush1.msra.mxu0 0.0
    %265 = vmatprep.subr.mxu0 0.0
    %266 = vmatpush1.msra.mxu0 0.0
    %267 = vmatprep.subr.mxu0 0.0
    %268 = vmatpush1.msra.mxu0 0.0
    %269 = vmatprep.subr.mxu0 0.0
    %270 = vmatpush1.msra.mxu0 0.0
    %271 = vmatprep.subr.mxu0 0.0
    %272 = vmatpush1.msra.mxu0 0.0
    %273 = vmatprep.subr.mxu0 0.0
    %274 = vmatpush1.msra.mxu0 0.0
    %275 = vmatprep.subr.mxu0 0.0
    %276 = vmatpush1.msra.mxu0 0.0
    %277 = vmatprep.subr.mxu0 0.0
    %278 = vmatpush1.msra.mxu0 0.0
    %279 = vmatprep.subr.mxu0 0.0
    %280 = vmatpush1.msra.mxu0 0.0
    %281 = vmatprep.subr.mxu0 0.0
    %282 = vmatpush1.msra.mxu0 0.0
    %283 = vmatprep.subr.mxu0 0.0
    %284 = vmatpush1.msra.mxu0 0.0
    %285 = vmatprep.subr.mxu0 0.0
    %286 = vmatpush1.msra.mxu0 0.0
    %287 = vmatprep.subr.mxu0 0.0
    %288 = vmatpush1.msra.mxu0 0.0
    %289 = vmatprep.subr.mxu0 0.0
    %290 = vmatpush1.msra.mxu0 0.0
    %291 = vmatprep.subr.mxu0 0.0
    %292 = vmatpush1.msra.mxu0 0.0
    %293 = vmatprep.subr.mxu0 0.0
    %294 = vmatpush1.msra.mxu0 0.0
    %295 = vmatprep.mubr.f32.mxu0 0.0
    %296 = vmatmul.mubr.f32.gmra.mrb[0].mxu0 0.0
    %v297 = vpop.f32.mrb[0].mxu0
    %v298 = vadd.f32 0.0, %v297
    %v299 = vpop.f32.mrb[0].mxu0
    %300 = vdwg.mxu0
    %v301 = vadd.f32 %v193, %v298
    %v302 = vtanh.pop %v301
    %303 = vmatprep.subr.mxu0 0.0
    %304 = vmatpush1.msra.mxu0 %v95
    %305 = vmatprep.subr.mxu0 0.0
    %306 = vmatpush1.msra.mxu0 %v96
    %307 = vmatprep.subr.mxu0 0.0
    %308 = vmatpush1.msra.mxu0 %v97
    %309 = vmatprep.subr.mxu0 0.0
    %310 = vmatpush1.msra.mxu0 %v98
    %311 = vmatprep.subr.mxu0 0.0
    %312 = vmatpush1.msra.mxu0 %v99
    %313 = vmatprep.subr.mxu0 0.0
    %314 = vmatpush1.msra.mxu0 %v100
    %315 = vmatprep.subr.mxu0 0.0
    %316 = vmatpush1.msra.mxu0 %v101
    %317 = vmatprep.subr.mxu0 0.0
    %318 = vmatpush1.msra.mxu0 %v102
    %319 = vmatprep.subr.mxu0 0.0
    %320 = vmatpush1.msra.mxu0 %v103
    %321 = vmatprep.subr.mxu0 0.0
    %322 = vmatpush1.msra.mxu0 %v104
    %323 = vmatprep.subr.mxu0 0.0
    %324 = vmatpush1.msra.mxu0 %v105
    %325 = vmatprep.subr.mxu0 0.0
    %326 = vmatpush1.msra.mxu0 %v106
    %327 = vmatprep.subr.mxu0 0.0
    %328 = vmatpush1.msra.mxu0 %v107
    %329 = vmatprep.subr.mxu0 0.0
    %330 = vmatpush1.msra.mxu0 %v108
    %331 = vmatprep.subr.mxu0 0.0
    %332 = vmatpush1.msra.mxu0 %v109
    %333 = vmatprep.subr.mxu0 0.0
    %334 = vmatpush1.msra.mxu0 %v110
    %335 = vmatprep.subr.mxu0 0.0
    %336 = vmatpush1.msra.mxu0 0.0
    %337 = vmatprep.subr.mxu0 0.0
    %338 = vmatpush1.msra.mxu0 0.0
    %339 = vmatprep.subr.mxu0 0.0
    %340 = vmatpush1.msra.mxu0 0.0
    %341 = vmatprep.subr.mxu0 0.0
    %342 = vmatpush1.msra.mxu0 0.0
    %343 = vmatprep.subr.mxu0 0.0
    %344 = vmatpush1.msra.mxu0 0.0
    %345 = vmatprep.subr.mxu0 0.0
    %346 = vmatpush1.msra.mxu0 0.0
    %347 = vmatprep.subr.mxu0 0.0
    %348 = vmatpush1.msra.mxu0 0.0
    %349 = vmatprep.subr.mxu0 0.0
    %350 = vmatpush1.msra.mxu0 0.0
    %351 = vmatprep.subr.mxu0 0.0
    %352 = vmatpush1.msra.mxu0 0.0
    %353 = vmatprep.subr.mxu0 0.0
    %354 = vmatpush1.msra.mxu0 0.0
    %355 = vmatprep.subr.mxu0 0.0
    %356 = vmatpush1.msra.mxu0 0.0
    %357 = vmatprep.subr.mxu0 0.0
    %358 = vmatpush1.msra.mxu0 0.0
    %359 = vmatprep.subr.mxu0 0.0
    %360 = vmatpush1.msra.mxu0 0.0
    %361 = vmatprep.subr.mxu0 0.0
    %362 = vmatpush1.msra.mxu0 0.0
    %363 = vmatprep.subr.mxu0 0.0
    %364 = vmatpush1.msra.mxu0 0.0
    %365 = vmatprep.subr.mxu0 0.0
    %366 = vmatpush1.msra.mxu0 0.0
    %367 = vmatprep.mubr.f32.mxu0 0.0
    %368 = vmatmul.mubr.f32.gmra.mrb[0].mxu0 %v302
    %v369 = vpop.f32.mrb[0].mxu0
    %v370 = vadd.f32 0.0, %v369
    %v371 = vpop.f32.mrb[0].mxu0
    %372 = vdwg.mxu0
    %v373 = vadd.f32 %v198, %v370
    %v374 = vtanh.pop %v373
    %375 = vmatprep.subr.mxu0 0.0
    %376 = vmatpush1.msra.mxu0 %v95
    %377 = vmatprep.subr.mxu0 0.0
    %378 = vmatpush1.msra.mxu0 %v96
    %379 = vmatprep.subr.mxu0 0.0
    %380 = vmatpush1.msra.mxu0 %v97
    %381 = vmatprep.subr.mxu0 0.0
    %382 = vmatpush1.msra.mxu0 %v98
    %383 = vmatprep.subr.mxu0 0.0
    %384 = vmatpush1.msra.mxu0 %v99
    %385 = vmatprep.subr.mxu0 0.0
    %386 = vmatpush1.msra.mxu0 %v100
    %387 = vmatprep.subr.mxu0 0.0
    %388 = vmatpush1.msra.mxu0 %v101
    %389 = vmatprep.subr.mxu0 0.0
    %390 = vmatpush1.msra.mxu0 %v102
    %391 = vmatprep.subr.mxu0 0.0
    %392 = vmatpush1.msra.mxu0 %v103
    %393 = vmatprep.subr.mxu0 0.0
    %394 = vmatpush1.msra.mxu0 %v104
    %395 = vmatprep.subr.mxu0 0.0
    %396 = vmatpush1.msra.mxu0 %v105
    %397 = vmatprep.subr.mxu0 0.0
    %398 = vmatpush1.msra.mxu0 %v106
    %399 = vmatprep.subr.mxu0 0.0
    %400 = vmatpush1.msra.mxu0 %v107
    %401 = vmatprep.subr.mxu0 0.0
    %402 = vmatpush1.msra.mxu0 %v108
    %403 = vmatprep.subr.mxu0 0.0
    %404 = vmatpush1.msra.mxu0 %v109
    %405 = vmatprep.subr.mxu0 0.0
    %406 = vmatpush1.msra.mxu0 %v110
    %407 = vmatprep.subr.mxu0 0.0
    %408 = vmatpush1.msra.mxu0 0.0
    %409 = vmatprep.subr.mxu0 0.0
    %410 = vmatpush1.msra.mxu0 0.0
    %411 = vmatprep.subr.mxu0 0.0
    %412 = vmatpush1.msra.mxu0 0.0
    %413 = vmatprep.subr.mxu0 0.0
    %414 = vmatpush1.msra.mxu0 0.0
    %415 = vmatprep.subr.mxu0 0.0
    %416 = vmatpush1.msra.mxu0 0.0
    %417 = vmatprep.subr.mxu0 0.0
    %418 = vmatpush1.msra.mxu0 0.0
    %419 = vmatprep.subr.mxu0 0.0
    %420 = vmatpush1.msra.mxu0 0.0
    %421 = vmatprep.subr.mxu0 0.0
    %422 = vmatpush1.msra.mxu0 0.0
    %423 = vmatprep.subr.mxu0 0.0
    %424 = vmatpush1.msra.mxu0 0.0
    %425 = vmatprep.subr.mxu0 0.0
    %426 = vmatpush1.msra.mxu0 0.0
    %427 = vmatprep.subr.mxu0 0.0
    %428 = vmatpush1.msra.mxu0 0.0
    %429 = vmatprep.subr.mxu0 0.0
    %430 = vmatpush1.msra.mxu0 0.0
    %431 = vmatprep.subr.mxu0 0.0
    %432 = vmatpush1.msra.mxu0 0.0
    %433 = vmatprep.subr.mxu0 0.0
    %434 = vmatpush1.msra.mxu0 0.0
    %435 = vmatprep.subr.mxu0 0.0
    %436 = vmatpush1.msra.mxu0 0.0
    %437 = vmatprep.subr.mxu0 0.0
    %438 = vmatpush1.msra.mxu0 0.0
    %439 = vmatprep.mubr.f32.mxu0 0.0
    %440 = vmatmul.mubr.f32.gmra.mrb[0].mxu0 %v374
    %v441 = vpop.f32.mrb[0].mxu0
    %v442 = vadd.f32 0.0, %v441
    %v443 = vpop.f32.mrb[0].mxu0
    %444 = vdwg.mxu0
    %v445 = vadd.f32 %v203, %v442
    %v446 = vtanh.pop %v445
    %447 = vmatprep.subr.mxu0 0.0
    %448 = vmatpush1.msra.mxu0 %v95
    %449 = vmatprep.subr.mxu0 0.0
    %450 = vmatpush1.msra.mxu0 %v96
    %451 = vmatprep.subr.mxu0 0.0
    %452 = vmatpush1.msra.mxu0 %v97
    %453 = vmatprep.subr.mxu0 0.0
    %454 = vmatpush1.msra.mxu0 %v98
    %455 = vmatprep.subr.mxu0 0.0
    %456 = vmatpush1.msra.mxu0 %v99
    %457 = vmatprep.subr.mxu0 0.0
    %458 = vmatpush1.msra.mxu0 %v100
    %459 = vmatprep.subr.mxu0 0.0
    %460 = vmatpush1.msra.mxu0 %v101
    %461 = vmatprep.subr.mxu0 0.0
    %462 = vmatpush1.msra.mxu0 %v102
    %463 = vmatprep.subr.mxu0 0.0
    %464 = vmatpush1.msra.mxu0 %v103
    %465 = vmatprep.subr.mxu0 0.0
    %466 = vmatpush1.msra.mxu0 %v104
    %467 = vmatprep.subr.mxu0 0.0
    %468 = vmatpush1.msra.mxu0 %v105
    %469 = vmatprep.subr.mxu0 0.0
    %470 = vmatpush1.msra.mxu0 %v106
    %471 = vmatprep.subr.mxu0 0.0
    %472 = vmatpush1.msra.mxu0 %v107
    %473 = vmatprep.subr.mxu0 0.0
    %474 = vmatpush1.msra.mxu0 %v108
    %475 = vmatprep.subr.mxu0 0.0
    %476 = vmatpush1.msra.mxu0 %v109
    %477 = vmatprep.subr.mxu0 0.0
    %478 = vmatpush1.msra.mxu0 %v110
    %479 = vmatprep.subr.mxu0 0.0
    %480 = vmatpush1.msra.mxu0 0.0
    %481 = vmatprep.subr.mxu0 0.0
    %482 = vmatpush1.msra.mxu0 0.0
    %483 = vmatprep.subr.mxu0 0.0
    %484 = vmatpush1.msra.mxu0 0.0
    %485 = vmatprep.subr.mxu0 0.0
    %486 = vmatpush1.msra.mxu0 0.0
    %487 = vmatprep.subr.mxu0 0.0
    %488 = vmatpush1.msra.mxu0 0.0
    %489 = vmatprep.subr.mxu0 0.0
    %490 = vmatpush1.msra.mxu0 0.0
    %491 = vmatprep.subr.mxu0 0.0
    %492 = vmatpush1.msra.mxu0 0.0
    %493 = vmatprep.subr.mxu0 0.0
    %494 = vmatpush1.msra.mxu0 0.0
    %495 = vmatprep.subr.mxu0 0.0
    %496 = vmatpush1.msra.mxu0 0.0
    %497 = vmatprep.subr.mxu0 0.0
    %498 = vmatpush1.msra.mxu0 0.0
    %499 = vmatprep.subr.mxu0 0.0
    %500 = vmatpush1.msra.mxu0 0.0
    %501 = vmatprep.subr.mxu0 0.0
    %502 = vmatpush1.msra.mxu0 0.0
    %503 = vmatprep.subr.mxu0 0.0
    %504 = vmatpush1.msra.mxu0 0.0
    %505 = vmatprep.subr.mxu0 0.0
    %506 = vmatpush1.msra.mxu0 0.0
    %507 = vmatprep.subr.mxu0 0.0
    %508 = vmatpush1.msra.mxu0 0.0
    %509 = vmatprep.subr.mxu0 0.0
    %510 = vmatpush1.msra.mxu0 0.0
    %511 = vmatprep.mubr.f32.mxu0 0.0
    %512 = vmatmul.mubr.f32.gmra.mrb[0].mxu0 %v446
    %v513 = vpop.f32.mrb[0].mxu0
    %v514 = vadd.f32 0.0, %v513
    %v515 = vpop.f32.mrb[0].mxu0
    %516 = vdwg.mxu0
    %v517 = vadd.f32 %v208, %v514
    %v518 = vtanh.pop %v517
    %519 = vmatprep.subr.mxu0 0.0
    %520 = vmatpush1.msra.mxu0 %v95
    %521 = vmatprep.subr.mxu0 0.0
    %522 = vmatpush1.msra.mxu0 %v96
    %523 = vmatprep.subr.mxu0 0.0
    %524 = vmatpush1.msra.mxu0 %v97
    %525 = vmatprep.subr.mxu0 0.0
    %526 = vmatpush1.msra.mxu0 %v98
    %527 = vmatprep.subr.mxu0 0.0
    %528 = vmatpush1.msra.mxu0 %v99
    %529 = vmatprep.subr.mxu0 0.0
    %530 = vmatpush1.msra.mxu0 %v100
    %531 = vmatprep.subr.mxu0 0.0
    %532 = vmatpush1.msra.mxu0 %v101
    %533 = vmatprep.subr.mxu0 0.0
    %534 = vmatpush1.msra.mxu0 %v102
    %535 = vmatprep.subr.mxu0 0.0
    %536 = vmatpush1.msra.mxu0 %v103
    %537 = vmatprep.subr.mxu0 0.0
    %538 = vmatpush1.msra.mxu0 %v104
    %539 = vmatprep.subr.mxu0 0.0
    %540 = vmatpush1.msra.mxu0 %v105
    %541 = vmatprep.subr.mxu0 0.0
    %542 = vmatpush1.msra.mxu0 %v106
    %543 = vmatprep.subr.mxu0 0.0
    %544 = vmatpush1.msra.mxu0 %v107
    %545 = vmatprep.subr.mxu0 0.0
    %546 = vmatpush1.msra.mxu0 %v108
    %547 = vmatprep.subr.mxu0 0.0
    %548 = vmatpush1.msra.mxu0 %v109
    %549 = vmatprep.subr.mxu0 0.0
    %550 = vmatpush1.msra.mxu0 %v110
    %551 = vmatprep.subr.mxu0 0.0
    %552 = vmatpush1.msra.mxu0 0.0
    %553 = vmatprep.subr.mxu0 0.0
    %554 = vmatpush1.msra.mxu0 0.0
    %555 = vmatprep.subr.mxu0 0.0
    %556 = vmatpush1.msra.mxu0 0.0
    %557 = vmatprep.subr.mxu0 0.0
    %558 = vmatpush1.msra.mxu0 0.0
    %559 = vmatprep.subr.mxu0 0.0
    %560 = vmatpush1.msra.mxu0 0.0
    %561 = vmatprep.subr.mxu0 0.0
    %562 = vmatpush1.msra.mxu0 0.0
    %563 = vmatprep.subr.mxu0 0.0
    %564 = vmatpush1.msra.mxu0 0.0
    %565 = vmatprep.subr.mxu0 0.0
    %566 = vmatpush1.msra.mxu0 0.0
    %567 = vmatprep.subr.mxu0 0.0
    %568 = vmatpush1.msra.mxu0 0.0
    %569 = vmatprep.subr.mxu0 0.0
    %570 = vmatpush1.msra.mxu0 0.0
    %571 = vmatprep.subr.mxu0 0.0
    %572 = vmatpush1.msra.mxu0 0.0
    %573 = vmatprep.subr.mxu0 0.0
    %574 = vmatpush1.msra.mxu0 0.0
    %575 = vmatprep.subr.mxu0 0.0
    %576 = vmatpush1.msra.mxu0 0.0
    %577 = vmatprep.subr.mxu0 0.0
    %578 = vmatpush1.msra.mxu0 0.0
    %579 = vmatprep.subr.mxu0 0.0
    %580 = vmatpush1.msra.mxu0 0.0
    %581 = vmatprep.subr.mxu0 0.0
    %582 = vmatpush1.msra.mxu0 0.0
    %583 = vmatprep.mubr.f32.mxu0 0.0
    %584 = vmatmul.mubr.f32.gmra.mrb[0].mxu0 %v518
    %v585 = vpop.f32.mrb[0].mxu0
    %v586 = vadd.f32 0.0, %v585
    %v587 = vpop.f32.mrb[0].mxu0
    %588 = vdwg.mxu0
    %v589 = vadd.f32 %v213, %v586
    %v590 = vtanh.pop %v589
    %591 = vmatprep.subr.mxu0 0.0
    %592 = vmatpush1.msra.mxu0 %v95
    %593 = vmatprep.subr.mxu0 0.0
    %594 = vmatpush1.msra.mxu0 %v96
    %595 = vmatprep.subr.mxu0 0.0
    %596 = vmatpush1.msra.mxu0 %v97
    %597 = vmatprep.subr.mxu0 0.0
    %598 = vmatpush1.msra.mxu0 %v98
    %599 = vmatprep.subr.mxu0 0.0
    %600 = vmatpush1.msra.mxu0 %v99
    %601 = vmatprep.subr.mxu0 0.0
    %602 = vmatpush1.msra.mxu0 %v100
    %603 = vmatprep.subr.mxu0 0.0
    %604 = vmatpush1.msra.mxu0 %v101
    %605 = vmatprep.subr.mxu0 0.0
    %606 = vmatpush1.msra.mxu0 %v102
    %607 = vmatprep.subr.mxu0 0.0
    %608 = vmatpush1.msra.mxu0 %v103
    %609 = vmatprep.subr.mxu0 0.0
    %610 = vmatpush1.msra.mxu0 %v104
    %611 = vmatprep.subr.mxu0 0.0
    %612 = vmatpush1.msra.mxu0 %v105
    %613 = vmatprep.subr.mxu0 0.0
    %614 = vmatpush1.msra.mxu0 %v106
    %615 = vmatprep.subr.mxu0 0.0
    %616 = vmatpush1.msra.mxu0 %v107
    %617 = vmatprep.subr.mxu0 0.0
    %618 = vmatpush1.msra.mxu0 %v108
    %619 = vmatprep.subr.mxu0 0.0
    %620 = vmatpush1.msra.mxu0 %v109
    %621 = vmatprep.subr.mxu0 0.0
    %622 = vmatpush1.msra.mxu0 %v110
    %623 = vmatprep.subr.mxu0 0.0
    %624 = vmatpush1.msra.mxu0 0.0
    %625 = vmatprep.subr.mxu0 0.0
    %626 = vmatpush1.msra.mxu0 0.0
    %627 = vmatprep.subr.mxu0 0.0
    %628 = vmatpush1.msra.mxu0 0.0
    %629 = vmatprep.subr.mxu0 0.0
    %630 = vmatpush1.msra.mxu0 0.0
    %631 = vmatprep.subr.mxu0 0.0
    %632 = vmatpush1.msra.mxu0 0.0
    %633 = vmatprep.subr.mxu0 0.0
    %634 = vmatpush1.msra.mxu0 0.0
    %635 = vmatprep.subr.mxu0 0.0
    %636 = vmatpush1.msra.mxu0 0.0
    %637 = vmatprep.subr.mxu0 0.0
    %638 = vmatpush1.msra.mxu0 0.0
    %639 = vmatprep.subr.mxu0 0.0
    %640 = vmatpush1.msra.mxu0 0.0
    %641 = vmatprep.subr.mxu0 0.0
    %642 = vmatpush1.msra.mxu0 0.0
    %643 = vmatprep.subr.mxu0 0.0
    %644 = vmatpush1.msra.mxu0 0.0
    %645 = vmatprep.subr.mxu0 0.0
    %646 = vmatpush1.msra.mxu0 0.0
    %647 = vmatprep.subr.mxu0 0.0
    %648 = vmatpush1.msra.mxu0 0.0
    %649 = vmatprep.subr.mxu0 0.0
    %650 = vmatpush1.msra.mxu0 0.0
    %651 = vmatprep.subr.mxu0 0.0
    %652 = vmatpush1.msra.mxu0 0.0
    %653 = vmatprep.subr.mxu0 0.0
    %654 = vmatpush1.msra.mxu0 0.0
    %655 = vmatprep.mubr.f32.mxu0 0.0
    %656 = vmatmul.mubr.f32.gmra.mrb[0].mxu0 %v590
    %v657 = vpop.f32.mrb[0].mxu0
    %v658 = vadd.f32 0.0, %v657
    %v659 = vpop.f32.mrb[0].mxu0
    %660 = vdwg.mxu0
    %v661 = vadd.f32 %v218, %v658
    %v662 = vtanh.pop %v661
    %663 = vmatprep.subr.mxu0 0.0
    %664 = vmatpush1.msra.mxu0 %v95
    %665 = vmatprep.subr.mxu0 0.0
    %666 = vmatpush1.msra.mxu0 %v96
    %667 = vmatprep.subr.mxu0 0.0
    %668 = vmatpush1.msra.mxu0 %v97
    %669 = vmatprep.subr.mxu0 0.0
    %670 = vmatpush1.msra.mxu0 %v98
    %671 = vmatprep.subr.mxu0 0.0
    %672 = vmatpush1.msra.mxu0 %v99
    %673 = vmatprep.subr.mxu0 0.0
    %674 = vmatpush1.msra.mxu0 %v100
    %675 = vmatprep.subr.mxu0 0.0
    %676 = vmatpush1.msra.mxu0 %v101
    %677 = vmatprep.subr.mxu0 0.0
    %678 = vmatpush1.msra.mxu0 %v102
    %679 = vmatprep.subr.mxu0 0.0
    %680 = vmatpush1.msra.mxu0 %v103
    %681 = vmatprep.subr.mxu0 0.0
    %682 = vmatpush1.msra.mxu0 %v104
    %683 = vmatprep.subr.mxu0 0.0
    %684 = vmatpush1.msra.mxu0 %v105
    %685 = vmatprep.subr.mxu0 0.0
    %686 = vmatpush1.msra.mxu0 %v106
    %687 = vmatprep.subr.mxu0 0.0
    %688 = vmatpush1.msra.mxu0 %v107
    %689 = vmatprep.subr.mxu0 0.0
    %690 = vmatpush1.msra.mxu0 %v108
    %691 = vmatprep.subr.mxu0 0.0
    %692 = vmatpush1.msra.mxu0 %v109
    %693 = vmatprep.subr.mxu0 0.0
    %694 = vmatpush1.msra.mxu0 %v110
    %695 = vmatprep.subr.mxu0 0.0
    %696 = vmatpush1.msra.mxu0 0.0
    %697 = vmatprep.subr.mxu0 0.0
    %698 = vmatpush1.msra.mxu0 0.0
    %699 = vmatprep.subr.mxu0 0.0
    %700 = vmatpush1.msra.mxu0 0.0
    %701 = vmatprep.subr.mxu0 0.0
    %702 = vmatpush1.msra.mxu0 0.0
    %703 = vmatprep.subr.mxu0 0.0
    %704 = vmatpush1.msra.mxu0 0.0
    %705 = vmatprep.subr.mxu0 0.0
    %706 = vmatpush1.msra.mxu0 0.0
    %707 = vmatprep.subr.mxu0 0.0
    %708 = vmatpush1.msra.mxu0 0.0
    %709 = vmatprep.subr.mxu0 0.0
    %710 = vmatpush1.msra.mxu0 0.0
    %711 = vmatprep.subr.mxu0 0.0
    %712 = vmatpush1.msra.mxu0 0.0
    %713 = vmatprep.subr.mxu0 0.0
    %714 = vmatpush1.msra.mxu0 0.0
    %715 = vmatprep.subr.mxu0 0.0
    %716 = vmatpush1.msra.mxu0 0.0
    %717 = vmatprep.subr.mxu0 0.0
    %718 = vmatpush1.msra.mxu0 0.0
    %719 = vmatprep.subr.mxu0 0.0
    %720 = vmatpush1.msra.mxu0 0.0
    %721 = vmatprep.subr.mxu0 0.0
    %722 = vmatpush1.msra.mxu0 0.0
    %723 = vmatprep.subr.mxu0 0.0
    %724 = vmatpush1.msra.mxu0 0.0
    %725 = vmatprep.subr.mxu0 0.0
    %726 = vmatpush1.msra.mxu0 0.0
    %727 = vmatprep.mubr.f32.mxu0 0.0
    %728 = vmatmul.mubr.f32.gmra.mrb[0].mxu0 %v662
    %v729 = vpop.f32.mrb[0].mxu0
    %v730 = vadd.f32 0.0, %v729
    %v731 = vpop.f32.mrb[0].mxu0
    %732 = vdwg.mxu0
    %v733 = vadd.f32 %v223, %v730
    %v734 = vtanh.pop %v733
    %735 = vmatprep.subr.mxu0 0.0
    %736 = vmatpush1.msra.mxu0 %v95
    %737 = vmatprep.subr.mxu0 0.0
    %738 = vmatpush1.msra.mxu0 %v96
    %739 = vmatprep.subr.mxu0 0.0
    %740 = vmatpush1.msra.mxu0 %v97
    %741 = vmatprep.subr.mxu0 0.0
    %742 = vmatpush1.msra.mxu0 %v98
    %743 = vmatprep.subr.mxu0 0.0
    %744 = vmatpush1.msra.mxu0 %v99
    %745 = vmatprep.subr.mxu0 0.0
    %746 = vmatpush1.msra.mxu0 %v100
    %747 = vmatprep.subr.mxu0 0.0
    %748 = vmatpush1.msra.mxu0 %v101
    %749 = vmatprep.subr.mxu0 0.0
    %750 = vmatpush1.msra.mxu0 %v102
    %751 = vmatprep.subr.mxu0 0.0
    %752 = vmatpush1.msra.mxu0 %v103
    %753 = vmatprep.subr.mxu0 0.0
    %754 = vmatpush1.msra.mxu0 %v104
    %755 = vmatprep.subr.mxu0 0.0
    %756 = vmatpush1.msra.mxu0 %v105
    %757 = vmatprep.subr.mxu0 0.0
    %758 = vmatpush1.msra.mxu0 %v106
    %759 = vmatprep.subr.mxu0 0.0
    %760 = vmatpush1.msra.mxu0 %v107
    %761 = vmatprep.subr.mxu0 0.0
    %762 = vmatpush1.msra.mxu0 %v108
    %763 = vmatprep.subr.mxu0 0.0
    %764 = vmatpush1.msra.mxu0 %v109
    %765 = vmatprep.subr.mxu0 0.0
    %766 = vmatpush1.msra.mxu0 %v110
    %767 = vmatprep.subr.mxu0 0.0
    %768 = vmatpush1.msra.mxu0 0.0
    %769 = vmatprep.subr.mxu0 0.0
    %770 = vmatpush1.msra.mxu0 0.0
    %771 = vmatprep.subr.mxu0 0.0
    %772 = vmatpush1.msra.mxu0 0.0
    %773 = vmatprep.subr.mxu0 0.0
    %774 = vmatpush1.msra.mxu0 0.0
    %775 = vmatprep.subr.mxu0 0.0
    %776 = vmatpush1.msra.mxu0 0.0
    %777 = vmatprep.subr.mxu0 0.0
    %778 = vmatpush1.msra.mxu0 0.0
    %779 = vmatprep.subr.mxu0 0.0
    %780 = vmatpush1.msra.mxu0 0.0
    %781 = vmatprep.subr.mxu0 0.0
    %782 = vmatpush1.msra.mxu0 0.0
    %783 = vmatprep.subr.mxu0 0.0
    %784 = vmatpush1.msra.mxu0 0.0
    %785 = vmatprep.subr.mxu0 0.0
    %786 = vmatpush1.msra.mxu0 0.0
    %787 = vmatprep.subr.mxu0 0.0
    %788 = vmatpush1.msra.mxu0 0.0
    %789 = vmatprep.subr.mxu0 0.0
    %790 = vmatpush1.msra.mxu0 0.0
    %791 = vmatprep.subr.mxu0 0.0
    %792 = vmatpush1.msra.mxu0 0.0
    %793 = vmatprep.subr.mxu0 0.0
    %794 = vmatpush1.msra.mxu0 0.0
    %795 = vmatprep.subr.mxu0 0.0
    %796 = vmatpush1.msra.mxu0 0.0
    %797 = vmatprep.subr.mxu0 0.0
    %798 = vmatpush1.msra.mxu0 0.0
    %799 = vmatprep.mubr.f32.mxu0 0.0
    %800 = vmatmul.mubr.f32.gmra.mrb[0].mxu0 %v734
    %v801 = vpop.f32.mrb[0].mxu0
    %v802 = vadd.f32 0.0, %v801
    %v803 = vpop.f32.mrb[0].mxu0
    %804 = vdwg.mxu0
    %v805 = vadd.f32 %v228, %v802
    %v806 = vtanh.pop %v805
    %v807 = vld [vmem:[#allocation8] sm:$0xff]
    %v808 = vld [vmem:[#allocation8 + $0x8] sm:$0xff]
    %v809 = vld [vmem:[#allocation8 + $0x10] sm:$0xff]
    %v810 = vld [vmem:[#allocation8 + $0x18] sm:$0xff]
    %v811 = vld [vmem:[#allocation8 + $0x20] sm:$0xff]
    %v812 = vld [vmem:[#allocation8 + $0x28] sm:$0xff]
    %v813 = vld [vmem:[#allocation8 + $0x30] sm:$0xff]
    %v814 = vld [vmem:[#allocation8 + $0x38] sm:$0xff]
    %v815 = vld [vmem:[#allocation8 + $0x40] sm:$0xff]
    %v816 = vld [vmem:[#allocation8 + $0x48] sm:$0xff]
    %v817 = vld [vmem:[#allocation8 + $0x50] sm:$0xff]
    %v818 = vld [vmem:[#allocation8 + $0x58] sm:$0xff]
    %v819 = vld [vmem:[#allocation8 + $0x60] sm:$0xff]
    %v820 = vld [vmem:[#allocation8 + $0x68] sm:$0xff]
    %v821 = vld [vmem:[#allocation8 + $0x70] sm:$0xff]
    %v822 = vld [vmem:[#allocation8 + $0x78] sm:$0xff]
    %v823 = vld [vmem:[%s5] sm:$0x1]
    %v825 = vlaneseq
    %v826 = vshrl.u32 %v825, 7
    %v827 = vsub.s32 0, %v826
    %v828 = vrot.slane %v823, %v827
    %830 = vmatprep.subr.mxu0 0.0
    %831 = vmatpush1.msra.mxu0 %v807
    %832 = vmatprep.subr.mxu0 0.0
    %833 = vmatpush1.msra.mxu0 %v808
    %834 = vmatprep.subr.mxu0 0.0
    %835 = vmatpush1.msra.mxu0 %v809
    %836 = vmatprep.subr.mxu0 0.0
    %837 = vmatpush1.msra.mxu0 %v810
    %838 = vmatprep.subr.mxu0 0.0
    %839 = vmatpush1.msra.mxu0 %v811
    %840 = vmatprep.subr.mxu0 0.0
    %841 = vmatpush1.msra.mxu0 %v812
    %842 = vmatprep.subr.mxu0 0.0
    %843 = vmatpush1.msra.mxu0 %v813
    %844 = vmatprep.subr.mxu0 0.0
    %845 = vmatpush1.msra.mxu0 %v814
    %846 = vmatprep.subr.mxu0 0.0
    %847 = vmatpush1.msra.mxu0 %v815
    %848 = vmatprep.subr.mxu0 0.0
    %849 = vmatpush1.msra.mxu0 %v816
    %850 = vmatprep.subr.mxu0 0.0
    %851 = vmatpush1.msra.mxu0 %v817
    %852 = vmatprep.subr.mxu0 0.0
    %853 = vmatpush1.msra.mxu0 %v818
    %854 = vmatprep.subr.mxu0 0.0
    %855 = vmatpush1.msra.mxu0 %v819
    %856 = vmatprep.subr.mxu0 0.0
    %857 = vmatpush1.msra.mxu0 %v820
    %858 = vmatprep.subr.mxu0 0.0
    %859 = vmatpush1.msra.mxu0 %v821
    %860 = vmatprep.subr.mxu0 0.0
    %861 = vmatpush1.msra.mxu0 %v822
    %862 = vmatprep.subr.mxu0 0.0
    %863 = vmatpush1.msra.mxu0 0.0
    %864 = vmatprep.subr.mxu0 0.0
    %865 = vmatpush1.msra.mxu0 0.0
    %866 = vmatprep.subr.mxu0 0.0
    %867 = vmatpush1.msra.mxu0 0.0
    %868 = vmatprep.subr.mxu0 0.0
    %869 = vmatpush1.msra.mxu0 0.0
    %870 = vmatprep.subr.mxu0 0.0
    %871 = vmatpush1.msra.mxu0 0.0
    %872 = vmatprep.subr.mxu0 0.0
    %873 = vmatpush1.msra.mxu0 0.0
    %874 = vmatprep.subr.mxu0 0.0
    %875 = vmatpush1.msra.mxu0 0.0
    %876 = vmatprep.subr.mxu0 0.0
    %877 = vmatpush1.msra.mxu0 0.0
    %878 = vmatprep.subr.mxu0 0.0
    %879 = vmatpush1.msra.mxu0 0.0
    %880 = vmatprep.subr.mxu0 0.0
    %881 = vmatpush1.msra.mxu0 0.0
    %882 = vmatprep.subr.mxu0 0.0
    %883 = vmatpush1.msra.mxu0 0.0
    %884 = vmatprep.subr.mxu0 0.0
    %885 = vmatpush1.msra.mxu0 0.0
    %886 = vmatprep.subr.mxu0 0.0
    %887 = vmatpush1.msra.mxu0 0.0
    %888 = vmatprep.subr.mxu0 0.0
    %889 = vmatpush1.msra.mxu0 0.0
    %890 = vmatprep.subr.mxu0 0.0
    %891 = vmatpush1.msra.mxu0 0.0
    %892 = vmatprep.subr.mxu0 0.0
    %893 = vmatpush1.msra.mxu0 0.0
    %894 = vmatprep.mubr.f32.mxu0 0.0
    %895 = vmatmul.mubr.f32.gmra.mrb[0].mxu0 %v806
    %v896 = vpop.f32.mrb[0].mxu0
    %v897 = vadd.f32 %v828, %v896
    %v898 = vpop.f32.mrb[0].mxu0
    %899 = vdwg.mxu0
    %900 = vmax.xlane.f32.xlu0 %v897
    %v901 = vpop.xlane.xlu0 %900
    %v902 = vsub.f32 %v897, %v901
    %v903 = vmul.f32 %v902, 1.442695
    %v904 = vpow.pop %v903
    %905 = vadd.xlane.f32.xlu0 %v904
    %v906 = vpop.xlane.xlu0 %905
    %v907 = vlog2.pop %v906
    %v908 = vmul.f32 %v907, 0.6931472
    %v909 = vsub.f32 %v902, %v908
    %910 = vst [vmem:[#allocation10] sm:$0xff] %v909
    // Predicated region
    $region42: #{tpu_custom_call.1} parent=1 // pred_check
      _
    $region43: #{tpu_custom_call.1} parent=1 // pred_check_branch
      %912 = sbr.rel (0) target = $region45
    $region44: #{tpu_custom_call.1} parent=1 // pred_region
      %s914 = ssub.s32 128, 128
      %915 = vsyncadd [#allocation4], %s914
      %s917 = sshll.u32 [#allocation10], 4
      %s918 = int_to_ptr.vmem [resolvable:$true] %s917
      %920 = dma.vmem_to_hbm [thread:$0]  %s918, 128, %s6, [#allocation4]
    $region45: #{tpu_custom_call.1} parent=1 // pred_fallthru
      _
    // Predicated region
    $region46: #{tpu_custom_call.1} parent=1 // pred_check
      _
    $region47: #{tpu_custom_call.1} parent=1 // pred_check_branch
      %922 = sbr.rel (0) target = $region49
    $region48: #{tpu_custom_call.1} parent=1 // pred_region
      %923 = dma.done [#allocation4], 128
    $region49: #{tpu_custom_call.1} parent=1 // pred_fallthru
      _
    %924 = vsyncpa [#allocation3], 1
    %925 = vsyncpa [#allocation6], 1
    %926 = vsyncpa [#allocation9], 1
    %927 = vsyncpa [#allocation4], 1

</llo_original>
